<compile_context>
chip_gen: v5e
topology: v5e:2x2
jax: 0.10.0
libtpu: 0.0.40
codegen_flags: <defaults>
</compile_context>

<pallas_src>
import functools

import jax
import jax.numpy as jnp
from jax import lax
from jax.experimental import pallas as pl
from jax.experimental.pallas import tpu as pltpu


def _pow_int(x, n):
    """x**n for static positive integer n via repeated multiplies (VALU only)."""
    acc = None
    base = x
    while n:
        if n & 1:
            acc = base if acc is None else acc * base
        n >>= 1
        if n:
            base = base * base
    return acc


def _apply_pow(x, p):
    if float(p) == int(p) and int(p) >= 1:
        return _pow_int(x, int(p))
    return x ** p  # non-integer p: EUP exp/log path (only option)


def _apply_root(m, p):
    if p == 1:
        return m
    if p == 2:
        return jnp.sqrt(m)
    return m ** (1.0 / p)  # once per output element, negligible


def _gem_kernel(x_ref, o_ref, acc_ref, *, p, eps, hw, thw, need_mask):
    # x_ref: (Tb, Tc, Thw) block; o_ref: (Tb, Tc); acc_ref: (Tb, Tc) f32 scratch.
    k = pl.program_id(2)

    @pl.when(k == 0)
    def _init():
        acc_ref[...] = jnp.zeros_like(acc_ref)

    x = x_ref[...].astype(jnp.float32)
    xp = _apply_pow(jnp.maximum(x, eps), p)                 # clamp(min=eps).pow(p)
    if need_mask:                                           # exact HW-tail handling
        lane = lax.broadcasted_iota(jnp.int32, xp.shape, dimension=2)
        xp = jnp.where(k * thw + lane < hw, xp, 0.0)
    acc_ref[...] += jnp.sum(xp, axis=-1)                    # lane reduce

    @pl.when(k == pl.num_programs(2) - 1)
    def _finish():
        m = acc_ref[...] * (1.0 / hw)                       # avg_pool2d over (H, W)
        o_ref[...] = _apply_root(m, p).astype(o_ref.dtype)  # .pow(1/p)


def _pick_tiles(B, C, hw, block_elems):
    """Largest block <= block_elems f32 elems; lane axis (HW) kept dense first."""
    tb = min(B, 8)
    budget = max(block_elems // tb, 8 * 128)     # elements in the (C, HW) face
    if C * hw <= budget:                         # whole face fits: single k step
        return tb, C, hw
    if hw <= budget // 8:                        # full HW on lanes, tile C (mult of 8)
        tc = min(C, max(8, (budget // hw) // 8 * 8))
        return tb, tc, hw
    tc = min(C, 8)                               # huge HW: tile the reduction axis
    thw = max(128, (budget // tc) // 128 * 128)
    if thw >= hw:
        thw = hw
    return tb, tc, thw


def gem(x, p=3, eps=1e-06, block_elems=1 << 20):
    """x: (B, C, H, W).  Returns (B, C) in x.dtype (matches PyTorch GeM)."""
    B, C, H, W = x.shape
    hw = H * W
    x_flat = x.reshape(B, C, hw)                 # contiguous reshape, no copy

    tb, tc, thw = _pick_tiles(B, C, hw, block_elems)
    grid = (pl.cdiv(B, tb), pl.cdiv(C, tc), pl.cdiv(hw, thw))
    need_mask = (hw % thw) != 0                  # tail lanes of the last k block

    kernel = functools.partial(
        _gem_kernel, p=p, eps=float(eps), hw=hw, thw=thw, need_mask=need_mask)

    return pl.pallas_call(
        kernel,
        out_shape=jax.ShapeDtypeStruct((B, C), x.dtype),
        grid_spec=pltpu.PrefetchScalarGridSpec(
            num_scalar_prefetch=0,
            grid=grid,
            in_specs=[pl.BlockSpec((tb, tc, thw), lambda b, c, k: (b, c, k))],
            out_specs=pl.BlockSpec((tb, tc), lambda b, c, k: (b, c)),
            scratch_shapes=[pltpu.VMEM((tb, tc), jnp.float32)],
        ),
        compiler_params=pltpu.CompilerParams(
            dimension_semantics=("parallel", "parallel", "arbitrary"),
            vmem_limit_bytes=32 * 1024 * 1024,
        ),
    )(x_flat)


def gem_ref(x, p=3, eps=1e-06):
    """Pure-JAX reference matching the PyTorch forward."""
    xp = jnp.maximum(x.astype(jnp.float32), eps) ** p
    m = jnp.mean(xp, axis=(-2, -1))
    return (m ** (1.0 / p)).astype(x.dtype)


if __name__ == "__main__":
    key = jax.random.PRNGKey(0)

    # Primary test: small shape consistent with the module (single-block path).
    B, C, H, W = 2, 4, 16, 16
    x = jax.random.normal(key, (B, C, H, W), dtype=jnp.float32)
    y = jax.block_until_ready(gem(x, p=3, eps=1e-06))
    y_ref = gem_ref(x, p=3, eps=1e-06)
    assert y.shape == (B, C), y.shape
    assert jnp.allclose(y, y_ref, rtol=1e-5, atol=1e-5), (y, y_ref)

    # Secondary test: unaligned C boundary block (no host-side padding needed).
    B2, C2, H2, W2 = 3, 160, 50, 50
    x2 = jax.random.normal(jax.random.PRNGKey(1), (B2, C2, H2, W2), jnp.float32)
    y2 = jax.block_until_ready(gem(x2, p=3, eps=1e-06))
    y2_ref = gem_ref(x2, p=3, eps=1e-06)
    assert y2.shape == (B2, C2), y2.shape
    assert jnp.allclose(y2, y2_ref, rtol=1e-5, atol=1e-5), (y2, y2_ref)

    # Tertiary test: force HW (reduction-axis) tiling + tail mask + accumulator.
    B3, C3, H3, W3 = 2, 8, 16, 17
    x3 = jax.random.normal(jax.random.PRNGKey(2), (B3, C3, H3, W3), jnp.float32)
    y3 = jax.block_until_ready(gem(x3, p=3, eps=1e-06, block_elems=2048))
    y3_ref = gem_ref(x3, p=3, eps=1e-06)
    assert y3.shape == (B3, C3), y3.shape
    assert jnp.allclose(y3, y3_ref, rtol=1e-5, atol=1e-5), (y3, y3_ref)

    print("KERNEL_OK")
</pallas_src>

<mosaic_0001>
module attributes {stable_mosaic.version = 11 : i64} {
  func.func @_gem_kernel(%arg0: i32, %arg1: i32, %arg2: i32, %arg3: memref<2x4x256xf32, #tpu.memory_space<vmem>>, %arg4: memref<2x4xf32, #tpu.memory_space<vmem>>, %arg5: memref<2x4xf32, #tpu.memory_space<vmem>>) attributes {dimension_semantics = [#tpu.dimension_semantics<parallel>, #tpu.dimension_semantics<parallel>, #tpu.dimension_semantics<arbitrary>], iteration_bounds = array<i64: 1, 1, 1>, scalar_prefetch = 0 : i64, scratch_operands = 1 : i64, tpu.core_type = #tpu.core_type<tc>, window_params = [{transform_indices = @transform_0, window_bounds = array<i64: 2, 4, 256>}, {transform_indices = @transform_1, window_bounds = array<i64: 2, 4>}]} {
    %c0_i32 = arith.constant 0 : i32
    %0 = arith.cmpi eq, %arg2, %c0_i32 : i32
    %1 = arith.extui %0 : i1 to i32
    %c0_i32_0 = arith.constant 0 : i32
    %2 = arith.cmpi ne, %1, %c0_i32_0 : i32
    scf.if %2 {
      %cst_10 = arith.constant 0.000000e+00 : f32
      %15 = vector.broadcast %cst_10 : f32 to vector<2x4xf32>
      %c0_11 = arith.constant 0 : index
      %c0_12 = arith.constant 0 : index
      %16 = vector.load %arg5[%c0_11, %c0_12] : memref<2x4xf32, #tpu.memory_space<vmem>>, vector<2x4xf32>
      tpu.vector_store %arg5[%c0_11, %c0_12], %15 {strides = array<i32>} : memref<2x4xf32, #tpu.memory_space<vmem>>, vector<2x4xf32>,
    } else {
    }
    %c0 = arith.constant 0 : index
    %c0_1 = arith.constant 0 : index
    %c0_2 = arith.constant 0 : index
    %3 = vector.load %arg3[%c0, %c0_1, %c0_2] : memref<2x4x256xf32, #tpu.memory_space<vmem>>, vector<2x4x256xf32>
    %cst = arith.constant 9.99999997E-7 : f32
    %4 = vector.broadcast %cst : f32 to vector<2x4x256xf32>
    %5 = arith.maximumf %3, %4 : vector<2x4x256xf32>
    %6 = arith.mulf %5, %5 : vector<2x4x256xf32>
    %7 = arith.mulf %5, %6 : vector<2x4x256xf32>
    %c0_3 = arith.constant 0 : index
    %c0_4 = arith.constant 0 : index
    %8 = vector.load %arg5[%c0_3, %c0_4] : memref<2x4xf32, #tpu.memory_space<vmem>>, vector<2x4xf32>
    %cst_5 = arith.constant dense<0.000000e+00> : vector<2x4xf32>
    %9 = vector.multi_reduction <add>, %7, %cst_5 [2] : vector<2x4x256xf32> to vector<2x4xf32>
    %10 = arith.addf %8, %9 : vector<2x4xf32>
    %c0_6 = arith.constant 0 : index
    %c0_7 = arith.constant 0 : index
    %11 = vector.load %arg5[%c0_6, %c0_7] : memref<2x4xf32, #tpu.memory_space<vmem>>, vector<2x4xf32>
    tpu.vector_store %arg5[%c0_6, %c0_7], %10 {strides = array<i32>} : memref<2x4xf32, #tpu.memory_space<vmem>>, vector<2x4xf32>,
    %c0_i32_8 = arith.constant 0 : i32
    %12 = arith.cmpi eq, %arg2, %c0_i32_8 : i32
    %13 = arith.extui %12 : i1 to i32
    %c0_i32_9 = arith.constant 0 : i32
    %14 = arith.cmpi ne, %13, %c0_i32_9 : i32
    scf.if %14 {
      %c0_10 = arith.constant 0 : index
      %c0_11 = arith.constant 0 : index
      %15 = vector.load %arg5[%c0_10, %c0_11] : memref<2x4xf32, #tpu.memory_space<vmem>>, vector<2x4xf32>
      %cst_12 = arith.constant 3.906250e-03 : f32
      %16 = vector.broadcast %cst_12 : f32 to vector<2x4xf32>
      %17 = arith.mulf %15, %16 : vector<2x4xf32>
      %cst_13 = arith.constant 0.333333343 : f32
      %18 = vector.broadcast %cst_13 : f32 to vector<2x4xf32>
      %19 = math.powf %17, %18 : vector<2x4xf32>
      %c0_14 = arith.constant 0 : index
      %c0_15 = arith.constant 0 : index
      %20 = vector.load %arg4[%c0_14, %c0_15] : memref<2x4xf32, #tpu.memory_space<vmem>>, vector<2x4xf32>
      tpu.vector_store %arg4[%c0_14, %c0_15], %19 {strides = array<i32>} : memref<2x4xf32, #tpu.memory_space<vmem>>, vector<2x4xf32>,
    } else {
    }
    return
  }
  func.func @transform_0(%arg0: i32, %arg1: i32, %arg2: i32) -> (i32, i32, i32) {
    %c0_i32 = arith.constant 0 : i32
    return %arg0, %arg1, %arg2 : i32, i32, i32
  }
  func.func @transform_1(%arg0: i32, %arg1: i32, %arg2: i32) -> (i32, i32) {
    %c0_i32 = arith.constant 0 : i32
    return %arg0, %arg1 : i32, i32
  }
}

</mosaic_0001>

<llo_original>
// kernel: tpu_custom_call.1
$region0: #{tpu_custom_call.1}
  #allocation0 [shape = 'u32[]', space=smem, size = 0x4, offset = 0x4, fixed_abs, tag = 'smem constant byte address 0x4 - core index']
  #allocation1 [shape = 'u32[72,128]{1,0:T(1,128)}', space=vmem, size = 0x9000, scoped, tag = 'internal scratch']
  #allocation2 [shape = 'f32[2,4]{1,0:T(2,128)}', space=vmem, size = 0x400, scoped, tag = 'scratch operand']
  %s0 = inlined_call_operand.hbm [shape: f32[2,4,256], index: 0, kind: input, shape index: {}]
  %s1 = inlined_call_operand.hbm [shape: f32[2,4], index: 1, kind: output, shape index: {}]
  %s2 = sld [smem:[#allocation0]]
  $region26: #{tpu_custom_call.1} parent=0
    _
  %s4 = ssub.s32 1, %s2
  %s5 = scalar_select 0, %s4, %s2
  $region1: #{tpu_custom_call.1} parent=0
    #allocation3 [shape = 'u8[8192]{0}', space=vmem, size = 0x2000, scoped, tag = 'input window, operand 0, single buffered']
    #allocation4 [shape = 's32[1]{0}', space=sflag, size = 0x4, scoped, tag = 'scoped memory for tpu_custom_call.1']
    #allocation5 [shape = 's32[1]{0}', space=sflag, size = 0x4, scoped, tag = 'scoped memory for tpu_custom_call.1']
    #allocation6 [shape = 'u8[1024]{0}', space=vmem, size = 0x400, scoped, tag = 'output window, operand 0, single buffered']
    %6 = vsyncpa [#allocation4], 0
    %7 = vsyncpa [#allocation5], 0
    // Predicated region
    $region2: #{tpu_custom_call.1} parent=1 // pred_check
      _
    $region3: #{tpu_custom_call.1} parent=1 // pred_check_branch
      %9 = sbr.rel (0) target = $region5
    $region4: #{tpu_custom_call.1} parent=1 // pred_region
      %11 = vsyncadd [#allocation4], 0
      %s12 = sshll.u32 %s0, 4
      %s13 = int_to_ptr.hbm [resolvable:$true] %s12
      %s14 = sshll.u32 [#allocation3], 4
      %s15 = int_to_ptr.vmem [resolvable:$true] %s14
      %20 = dma.hbm_to_vmem [thread:$0]  %s13, 256, %s15, [#allocation4], 128, 128, 8
    $region5: #{tpu_custom_call.1} parent=1 // pred_fallthru
      _
    // Predicated region
    $region6: #{tpu_custom_call.1} parent=1 // pred_check
      _
    $region7: #{tpu_custom_call.1} parent=1 // pred_check_branch
      %22 = sbr.rel (0) target = $region9
    $region8: #{tpu_custom_call.1} parent=1 // pred_region
      %24 = dma.done [#allocation4], 256
    $region9: #{tpu_custom_call.1} parent=1 // pred_fallthru
      _
    %p25 = scmp.eq.s32.totalorder 0, 0
    // Predicated region
    $region10: #{tpu_custom_call.1} parent=1 // pred_check
      %p26 = pneg %p25
    $region11: #{tpu_custom_call.1} parent=1 // pred_check_branch
      %28 = sbr.rel (%p26) target = $region13
    $region12: #{tpu_custom_call.1} parent=1 // pred_region
      %vm29 = vcmask 25600
      %30 = vst.msk [vmem:[#allocation2] sm:$0x3] %vm29, 0.0
    $region13: #{tpu_custom_call.1} parent=1 // pred_fallthru
      _
    %v31 = vld [vmem:[#allocation3] sm:$0xff]
    %v32 = vld [vmem:[#allocation3 + $0x8] sm:$0xff]
    %v33 = vmax.f32 %v31, 1e-06
    %v34 = vmax.f32 %v32, 1e-06
    %v35 = vmul.f32 %v33, %v33
    %v36 = vmul.f32 %v34, %v34
    %v37 = vmul.f32 %v33, %v35
    %v38 = vmul.f32 %v34, %v36
    %v39 = vld [vmem:[#allocation2] sm:$0x3]
    %42 = vst [vmem:[#allocation1] ss:$2 sm:$0xff] %v37
    %v43 = vld.sshfl [vmem:[#allocation1] sm:$0xff pattern:$0x75316420]
    %v44 = vld.sshfl [vmem:[#allocation1 + $0x8] sm:$0xff pattern:$0x75316420]
    %s45 = scalar_lea.vmem [#allocation1], 16
    %46 = vst [vmem:[%s45] ss:$2 sm:$0xff] %v38
    %v47 = vld.sshfl [vmem:[#allocation1 + $0x10] sm:$0xff pattern:$0x75316420]
    %v48 = vld.sshfl [vmem:[#allocation1 + $0x18] sm:$0xff pattern:$0x75316420]
    %vm53 = vcmask 1043456
    %v54 = vsel %vm53, %v43, 0.0
    %v55 = vsel %vm53, %v44, 0.0
    %v56 = vadd.f32 %v54, %v55
    %57 = vadd.xlane.f32.xlu0 %v56
    %v58 = vpop.xlane.xlu0 %57
    %v59 = vsel %vm53, %v47, 0.0
    %v60 = vsel %vm53, %v48, 0.0
    %v61 = vadd.f32 %v59, %v60
    %62 = vadd.xlane.f32.xlu0 %v61
    %v63 = vpop.xlane.xlu0 %62
    %v66 = vlaneseq
    %v67 = vand.u32 %v66, 127
    %v68 = vperm.slane %v58, %v67
    %v69 = vperm.slane %v63, %v67
    %vm70 = vcmask 1041409
    %v71 = vsel %vm70, %v69, %v68
    %v73 = vadd.f32 %v39, %v71
    %vm74 = vcmask 25600
    %75 = vst.msk [vmem:[#allocation2] sm:$0x3] %vm74, %v73
    // Predicated region
    $region14: #{tpu_custom_call.1} parent=1 // pred_check
      %p76 = pneg %p25
    $region15: #{tpu_custom_call.1} parent=1 // pred_check_branch
      %78 = sbr.rel (%p76) target = $region17
    $region16: #{tpu_custom_call.1} parent=1 // pred_region
      %v79 = vld [vmem:[#allocation2] sm:$0x3]
      %v80 = vmul.f32 %v79, 0.00390625
      %v81 = vpow.f32 %v80, 0.33333334
      %82 = vst.msk [vmem:[#allocation6] sm:$0x3] %vm74, %v81
    $region17: #{tpu_custom_call.1} parent=1 // pred_fallthru
      _
    // Predicated region
    $region18: #{tpu_custom_call.1} parent=1 // pred_check
      _
    $region19: #{tpu_custom_call.1} parent=1 // pred_check_branch
      %84 = sbr.rel (0) target = $region21
    $region20: #{tpu_custom_call.1} parent=1 // pred_region
      %86 = vsyncadd [#allocation5], 0
      %s88 = sshll.u32 [#allocation6], 4
      %s89 = int_to_ptr.vmem [resolvable:$true] %s88
      %s90 = sshll.u32 %s1, 4
      %s91 = int_to_ptr.hbm [resolvable:$true] %s90
      %93 = dma.vmem_to_hbm [thread:$0]  %s89, 32, %s91, [#allocation5]
    $region21: #{tpu_custom_call.1} parent=1 // pred_fallthru
      _
    // Predicated region
    $region22: #{tpu_custom_call.1} parent=1 // pred_check
      _
    $region23: #{tpu_custom_call.1} parent=1 // pred_check_branch
      %95 = sbr.rel (0) target = $region25
    $region24: #{tpu_custom_call.1} parent=1 // pred_region
      %97 = dma.done [#allocation5], 32
    $region25: #{tpu_custom_call.1} parent=1 // pred_fallthru
      _
    %98 = vsyncpa [#allocation4], 1
    %99 = vsyncpa [#allocation5], 1

</llo_original>
